<compile_context>
chip_gen: v7x
topology: tpu7x:2x2x1
jax: 0.10.0
libtpu: 0.0.40
codegen_flags: <defaults>
</compile_context>

<pallas_src>
import functools

import jax
import jax.numpy as jnp
import numpy as np
from jax import lax
from jax.experimental import pallas as pl
from jax.experimental.pallas import tpu as pltpu


# --------------------------------------------------------------------------------------
# Generation-aware VMEM numbers
# --------------------------------------------------------------------------------------
def _vmem_params():
    """Returns (vmem_limit_bytes, per-step tile budget bytes)."""
    cap = 128 * 1024 * 1024
    try:
        cap = int(pltpu.get_tpu_info().vmem_capacity_bytes)
    except Exception:
        pass
    if cap <= 64 * 1024 * 1024:                       # v7x-class: 64 MiB per TensorCore
        return 40 * 1024 * 1024, 14 * 1024 * 1024
    return 64 * 1024 * 1024, 28 * 1024 * 1024         # v5e / v6e: 128 MiB


def _divisors_desc(n):
    return [d for d in range(n, 0, -1) if n % d == 0]


# --------------------------------------------------------------------------------------
# Kernel A: k == 1 fast path (depthwise scale folded into the pointwise weight).
# --------------------------------------------------------------------------------------
def _pointwise_kernel(w_ref, x_ref, o_ref, *, mxu_dtype):
    # w_ref: (O, C) fused weights    x_ref: (C, T)    o_ref: (O, T)  -- T lane-dense
    w = w_ref[...].astype(mxu_dtype)
    x = x_ref[...].astype(mxu_dtype)
    out = jnp.dot(w, x, preferred_element_type=jnp.float32)
    o_ref[...] = out.astype(o_ref.dtype)


def _pick_t_hw(hw, c, o, itemsize, budget_bytes, n_batch):
    """Largest lane-dense HW tile (multiple of 512, or the whole image) within budget."""
    per_lane = 2 * (c + o) * itemsize + 4 * o          # dbl-buffered in/out + f32 matmul result
    fixed = 2 * o * c * itemsize                       # weight block (dbl-buffered)
    whole_fits = hw * per_lane + fixed <= budget_bytes
    if whole_fits and (n_batch >= 2 or hw < 1024):
        return hw
    if whole_fits:
        # batch == 1: keep >= 2 grid steps so both v7x TensorCores get work.
        return max(128, (hw // 2) // 128 * 128)
    t = max(512, (budget_bytes - fixed) // per_lane // 512 * 512)
    return min(t, hw)


def _pointwise_only(x, w_dw, w_pw, mxu_dtype, padding):
    n, c, h, w = x.shape
    o = w_pw.shape[0]
    vmem_limit, budget = _vmem_params()

    # Fold the 1x1 depthwise (per-channel scale) into the pointwise weight.
    w_fused = (w_pw * w_dw[:, 0, 0][None, :]).astype(x.dtype)            # (O, C)
    if padding > 0:
        x = jnp.pad(x, ((0, 0), (0, 0), (padding, padding), (padding, padding)))
    hp, wp = x.shape[2], x.shape[3]
    hw = hp * wp
    x_r = x.reshape(n, c, hw)

    t_hw = _pick_t_hw(hw, c, o, x.dtype.itemsize, budget, n)
    n_t = pl.cdiv(hw, t_hw)

    flops = 2 * n * hw * c * o
    bytes_accessed = int(n * hw * (c + o) * x.dtype.itemsize
                         + w_fused.size * w_fused.dtype.itemsize)

    out = pl.pallas_call(
        functools.partial(_pointwise_kernel, mxu_dtype=mxu_dtype),
        out_shape=jax.ShapeDtypeStruct((n, o, hw), x.dtype),
        grid_spec=pltpu.PrefetchScalarGridSpec(
            num_scalar_prefetch=0,
            grid=(n, n_t),
            in_specs=[
                pl.BlockSpec((o, c), lambda b, t: (0, 0)),              # fused weights
                pl.BlockSpec((None, c, t_hw), lambda b, t: (b, 0, t)),  # (C, T) slab
            ],
            out_specs=pl.BlockSpec((None, o, t_hw), lambda b, t: (b, 0, t)),
        ),
        compiler_params=pltpu.CompilerParams(
            dimension_semantics=("parallel", "parallel"),
            vmem_limit_bytes=vmem_limit,
        ),
        cost_estimate=pl.CostEstimate(flops=int(flops), transcendentals=0,
                                      bytes_accessed=bytes_accessed),
    )(w_fused, x_r)
    return out.reshape(n, o, hp, wp)                                     # free reshape


# --------------------------------------------------------------------------------------
# Kernel B: general k > 1 path (channels-last depthwise + lane-dense pointwise matmul).
# --------------------------------------------------------------------------------------
def _dwsep_kernel(wdw_ref, wpw_ref, xm_ref, xh_ref, o_ref, *,
                  k, dilation, tile_h, w_out, halo, flat_out, mxu_dtype):
    # wdw_ref: (k*k, C)  depthwise taps (tap (i, j) at row i*k + j), channels on lanes
    # wpw_ref: (O, C)    pointwise weights
    # xm_ref : (tile_h, Wp, C)  main rows of this output strip (channels-last)
    # xh_ref : (halo,  Wp, C)   halo rows just below the strip
    # o_ref  : (O, tile_h*w_out) if flat_out else (tile_h, w_out, O)
    c = xm_ref.shape[-1]

    # Hoisted f32 cast: each element widened once (no-op for f32 inputs), not k*k times.
    xm = xm_ref[...].astype(jnp.float32)                                 # (tile_h, Wp, C)
    xh = xh_ref[...].astype(jnp.float32)                                 # (halo,  Wp, C)
    wdw = wdw_ref[...].astype(jnp.float32)                               # (k*k, C)

    acc = jnp.zeros((tile_h, w_out, c), jnp.float32)
    for i in range(k):
        di = i * dilation
        if di == 0:
            rows = xm
        elif di == tile_h:
            rows = xh
        else:
            # Static split of the tap's rows: main part + halo part (no extra strip copy).
            rows = jnp.concatenate([xm[di:], xh[:di]], axis=0)           # (tile_h, Wp, C)
        for j in range(k):
            dj = j * dilation
            tap = wdw[i * k + j][None, None, :]                          # (1, 1, C)
            acc = acc + rows[:, dj:dj + w_out, :] * tap                  # lane-wise FMA

    a = acc.reshape(tile_h * w_out, c).astype(mxu_dtype)                 # (M, C)
    wpw = wpw_ref[...].astype(mxu_dtype)                                 # (O, C)
    if flat_out:
        # (O, C) x (M, C)^T -> (O, M): lane-dense, NCHW-native store.
        out = lax.dot_general(wpw, a, (((1,), (1,)), ((), ())),
                              preferred_element_type=jnp.float32)
        o_ref[...] = out.astype(o_ref.dtype)
    else:
        # Fallback: NHWC strip (wrapper transposes back to NCHW).
        out = lax.dot_general(a, wpw, (((1,), (1,)), ((), ())),
                              preferred_element_type=jnp.float32)        # (M, O)
        o_ref[...] = out.reshape(o_ref.shape).astype(o_ref.dtype)


def _step_bytes(th, w_out, wp, c, o, k, halo, itemsize):
    m = th * w_out
    return (2 * th * wp * c * itemsize          # main strip (double-buffered)
            + 2 * halo * wp * c * itemsize      # halo strip (double-buffered)
            + 2 * o * m * itemsize              # output block (double-buffered)
            + (th + halo) * wp * c * 4          # hoisted f32 casts of the strip
            + m * c * 4 + m * c * itemsize      # f32 accumulator + matmul LHS
            + o * m * 4                         # f32 matmul result
            + 2 * (k * k + o) * c * itemsize)   # weights


def _pick_tile_h(h_out, w_out, wp, c, o, k, halo, itemsize, budget_bytes, n_batch):
    cands = [th for th in _divisors_desc(h_out) if th >= halo]
    fitting = [th for th in cands
               if _step_bytes(th, w_out, wp, c, o, k, halo, itemsize) <= budget_bytes]
    pool = fitting if fitting else [min(cands)]

    def score(th):
        m = th * w_out
        ns = h_out // th
        return (th % halo == 0,                    # halo rows straight from x (no gather)
                (m % 128 == 0) or ns == 1,         # lane-dense flat NCHW output
                n_batch * ns >= 2,                 # >= 2 grid steps (v7x: 2 TensorCores)
                m >= 256,                          # fill the 256-wide MXU (v6e/v7x)
                m)                                 # amortize per-step overhead
    return max(pool, key=score)


def _depthwise_separable(x, w_dw, w_pw, k, d, p, h_out, w_out, tile_h, mxu_dtype):
    n, c, h, w = x.shape
    o = w_pw.shape[0]
    halo = d * (k - 1)
    vmem_limit, budget = _vmem_params()

    # Channels-last so C sits on the 128-lane axis inside the kernel.
    # TODO(synk): fuse the NCHW->NHWC transpose and border padding into the kernel
    # (in-kernel XLU transpose + masked borders) to avoid these wrapper-side HBM passes.
    x_nhwc = jnp.transpose(x, (0, 2, 3, 1))                              # (N, H, W, C)
    if p > 0:
        x_nhwc = jnp.pad(x_nhwc, ((0, 0), (p, p), (p, p), (0, 0)))
    hp, wp = x_nhwc.shape[1], x_nhwc.shape[2]
    assert hp == h_out + halo and wp == w_out + halo

    if h_out < halo:
        # TODO(synk): tiny-output / huge-dilation case needs a dedicated single-window path.
        raise NotImplementedError("h_out < dilation*(k-1) is not supported")

    if tile_h is None:
        tile_h = _pick_tile_h(h_out, w_out, wp, c, o, k, halo, x.dtype.itemsize, budget, n)
    if h_out % tile_h != 0 or tile_h < halo:
        # TODO(synk): ragged heights need a masked last strip.
        raise ValueError(f"tile_h={tile_h} must divide h_out={h_out} and be >= halo={halo}")
    n_strips = h_out // tile_h
    m = tile_h * w_out

    direct_halo = (tile_h % halo == 0)
    flat_out = (m % 128 == 0) or (n_strips == 1)

    # Weights: depthwise taps as (k*k, C) lane vectors, pointwise as (O, C).
    wdw_t = jnp.transpose(w_dw, (1, 2, 0)).reshape(k * k, c)

    in_specs = [
        pl.BlockSpec((k * k, c), lambda b, t: (0, 0)),                      # dw taps
        pl.BlockSpec((o, c), lambda b, t: (0, 0)),                          # pw weights
        pl.BlockSpec((None, tile_h, wp, c), lambda b, t: (b, t, 0, 0)),     # main strip
    ]
    if direct_halo:
        # Halo rows fetched straight from the padded input (no wrapper gather, no extra HBM).
        halo_arg = x_nhwc
        s = tile_h // halo
        in_specs.append(pl.BlockSpec((None, halo, wp, c),
                                     lambda b, t, s=s: (b, (t + 1) * s, 0, 0)))
    else:
        # TODO(synk): fallback gathers halo rows wrapper-side (extra HBM pass over halo/tile_h
        # of the input); only hit when halo does not divide tile_h.
        starts = (np.arange(n_strips) + 1) * tile_h
        row_idx = (starts[:, None] + np.arange(halo)[None, :]).reshape(-1)
        halo_arg = x_nhwc[:, row_idx, :, :].reshape(n * n_strips, halo, wp, c)
        in_specs.append(pl.BlockSpec((None, halo, wp, c),
                                     lambda b, t, ns=n_strips: (b * ns + t, 0, 0, 0)))

    if flat_out:
        out_shape = jax.ShapeDtypeStruct((n, o, h_out * w_out), x.dtype)   # NCHW, flat HW
        out_spec = pl.BlockSpec((None, o, m), lambda b, t: (b, 0, t))
    else:
        out_shape = jax.ShapeDtypeStruct((n, h_out, w_out, o), x.dtype)    # NHWC fallback
        out_spec = pl.BlockSpec((None, tile_h, w_out, o), lambda b, t: (b, t, 0, 0))

    flops = 2 * n * h_out * w_out * c * (k * k + o)
    bytes_accessed = int(n * hp * wp * c * x.dtype.itemsize
                         + n * h_out * w_out * o * x.dtype.itemsize
                         + (k * k + o) * c * x.dtype.itemsize)

    kernel = functools.partial(_dwsep_kernel, k=k, dilation=d, tile_h=tile_h,
                               w_out=w_out, halo=halo, flat_out=flat_out,
                               mxu_dtype=mxu_dtype)

    out = pl.pallas_call(
        kernel,
        out_shape=out_shape,
        grid_spec=pltpu.PrefetchScalarGridSpec(
            num_scalar_prefetch=0,
            grid=(n, n_strips),
            in_specs=in_specs,
            out_specs=out_spec,
        ),
        compiler_params=pltpu.CompilerParams(
            dimension_semantics=("parallel", "parallel"),
            vmem_limit_bytes=vmem_limit,
        ),
        cost_estimate=pl.CostEstimate(flops=int(flops), transcendentals=0,
                                      bytes_accessed=bytes_accessed),
    )(wdw_t, w_pw, x_nhwc, halo_arg)

    if flat_out:
        return out.reshape(n, o, h_out, w_out)                           # free reshape
    return jnp.transpose(out, (0, 3, 1, 2))                              # fallback only


# --------------------------------------------------------------------------------------
# Public wrapper
# --------------------------------------------------------------------------------------
def depthwise_conv2d(x, w_dw, w_pw, *, kernel_size=1, stride=1, padding=0,
                     dilation=1, tile_h=None, mxu_dtype=None):
    """Fused depthwise (groups=C) + pointwise (1x1) conv; stride=1, bias=False.

    x    : (N, C, H, W)     w_dw : (C, k, k)     w_pw : (O, C)
    returns (N, O, H_out, W_out), NCHW, dtype of x.
    """
    if stride != 1:
        # TODO(synk): strided depthwise conv not implemented (module default is stride=1).
        raise NotImplementedError("DepthWiseConv2d Pallas kernel: only stride=1 is supported")
    n, c, h, w = x.shape
    k = int(kernel_size)
    d = int(dilation)
    p = int(padding)
    h_out = h + 2 * p - d * (k - 1)
    w_out = w + 2 * p - d * (k - 1)
    assert h_out > 0 and w_out > 0, "output spatial size must be positive"

    if mxu_dtype is None:
        # bf16 MXU operands only when the input already is bf16 (keeps f32 numerics for
        # f32 inputs); accumulation is f32 (preferred_element_type) in both cases.
        mxu_dtype = jnp.bfloat16 if x.dtype == jnp.bfloat16 else jnp.float32

    if k == 1:
        return _pointwise_only(x, w_dw, w_pw, mxu_dtype, p)
    return _depthwise_separable(x, w_dw, w_pw, k, d, p, h_out, w_out, tile_h, mxu_dtype)


# --------------------------------------------------------------------------------------
# Pure-JAX reference (mirrors PyTorch Conv2d semantics)
# --------------------------------------------------------------------------------------
def _reference(x, w_dw, w_pw, *, kernel_size=1, padding=0, dilation=1):
    c = x.shape[1]
    o = w_pw.shape[0]
    dw = jax.lax.conv_general_dilated(
        x, w_dw.reshape(c, 1, kernel_size, kernel_size),
        window_strides=(1, 1),
        padding=[(padding, padding), (padding, padding)],
        rhs_dilation=(dilation, dilation),
        dimension_numbers=("NCHW", "OIHW", "NCHW"),
        feature_group_count=c,
    )
    pw = jax.lax.conv_general_dilated(
        dw, w_pw.reshape(o, c, 1, 1),
        window_strides=(1, 1), padding=[(0, 0), (0, 0)],
        dimension_numbers=("NCHW", "OIHW", "NCHW"),
    )
    return pw


if __name__ == "__main__":
    N, C, O, H, W = 2, 4, 8, 16, 16
    key = jax.random.PRNGKey(0)

    configs = [
        # Module defaults: k=1, stride=1, pad=0, dil=1  -> folded-weight matmul path.
        dict(kernel_size=1, padding=0, dilation=1, tile_h=None),
        # General path: 3x3 depthwise, 2 H-strips, direct halo blocks, flat NCHW output.
        dict(kernel_size=3, padding=1, dilation=1, tile_h=8),
        # Dilated path: 3x3 depthwise, dilation 2 (halo = 4 rows).
        dict(kernel_size=3, padding=2, dilation=2, tile_h=8),
        # Auto-picked tiling (single strip, M = 256 for the 256-wide MXU).
        dict(kernel_size=3, padding=1, dilation=1, tile_h=None),
        # Odd shapes: exercises the halo-gather and NHWC-output fallbacks.
        dict(kernel_size=4, padding=1, dilation=1, tile_h=5),
    ]

    for cfg in configs:
        k = cfg["kernel_size"]
        kx, kd, kp, key = jax.random.split(key, 4)
        x = jax.random.normal(kx, (N, C, H, W), dtype=jnp.float32)
        w_dw = jax.random.normal(kd, (C, k, k), dtype=jnp.float32) * 0.1
        w_pw = jax.random.normal(kp, (O, C), dtype=jnp.float32) * 0.1

        out = depthwise_conv2d(x, w_dw, w_pw, kernel_size=k,
                               padding=cfg["padding"], dilation=cfg["dilation"],
                               tile_h=cfg["tile_h"])
        out = jax.block_until_ready(out)

        ref = _reference(x, w_dw, w_pw, kernel_size=k,
                         padding=cfg["padding"], dilation=cfg["dilation"])
        assert out.shape == ref.shape, (cfg, out.shape, ref.shape)
        max_err = float(jnp.max(jnp.abs(out - ref)))
        assert jnp.allclose(out, ref, atol=1e-4, rtol=1e-4), (cfg, max_err)

    print("KERNEL_OK")
</pallas_src>

<mosaic_0001>
module attributes {stable_mosaic.version = 11 : i64} {
  func.func @_pointwise_kernel(%arg0: i32, %arg1: i32, %arg2: memref<8x4xf32, #tpu.memory_space<vmem>>, %arg3: memref<1x4x256xf32, #tpu.memory_space<vmem>>, %arg4: memref<1x8x256xf32, #tpu.memory_space<vmem>>) attributes {dimension_semantics = [#tpu.dimension_semantics<parallel>, #tpu.dimension_semantics<parallel>], iteration_bounds = array<i64: 2, 1>, scalar_prefetch = 0 : i64, scratch_operands = 0 : i64, tpu.core_type = #tpu.core_type<tc>, window_params = [{pipeline_mode = #tpu.pipeline_mode<synchronous>, transform_indices = @transform_0, window_bounds = array<i64: 8, 4>}, {transform_indices = @transform_1, window_bounds = array<i64: 1, 4, 256>}, {transform_indices = @transform_2, window_bounds = array<i64: 1, 8, 256>}]} {
    %c0 = arith.constant 0 : index
    %c0_0 = arith.constant 0 : index
    %0 = vector.load %arg2[%c0, %c0_0] : memref<8x4xf32, #tpu.memory_space<vmem>>, vector<8x4xf32>
    %c0_1 = arith.constant 0 : index
    %c0_2 = arith.constant 0 : index
    %c0_3 = arith.constant 0 : index
    %1 = vector.load %arg3[%c0_1, %c0_2, %c0_3] : memref<1x4x256xf32, #tpu.memory_space<vmem>>, vector<1x4x256xf32>
    %2 = vector.shape_cast %1 : vector<1x4x256xf32> to vector<4x256xf32>
    %cst = arith.constant dense<0.000000e+00> : vector<8x256xf32>
    %3 = tpu.matmul %0, %2, %cst {dimension_numbers = #tpu.dot_dimension_numbers<[1], [0], [0], [1], [0, 0, 1, 1], [], []>} : vector<8x4xf32>, vector<4x256xf32>, vector<8x256xf32> -> vector<8x256xf32>
    %c0_4 = arith.constant 0 : index
    %c0_5 = arith.constant 0 : index
    %c0_6 = arith.constant 0 : index
    %4 = vector.load %arg4[%c0_4, %c0_5, %c0_6] : memref<1x8x256xf32, #tpu.memory_space<vmem>>, vector<1x8x256xf32>
    %5 = vector.shape_cast %4 : vector<1x8x256xf32> to vector<8x256xf32>
    %6 = vector.shape_cast %3 : vector<8x256xf32> to vector<1x8x256xf32>
    tpu.vector_store %arg4[%c0_4, %c0_5, %c0_6], %6 {strides = array<i32>} : memref<1x8x256xf32, #tpu.memory_space<vmem>>, vector<1x8x256xf32>,
    return
  }
  func.func @transform_0(%arg0: i32, %arg1: i32) -> (i32, i32) {
    %c0_i32 = arith.constant 0 : i32
    %c0_i32_0 = arith.constant 0 : i32
    %c0_i32_1 = arith.constant 0 : i32
    return %c0_i32, %c0_i32_0 : i32, i32
  }
  func.func @transform_1(%arg0: i32, %arg1: i32) -> (i32, i32, i32) {
    %c0_i32 = arith.constant 0 : i32
    %c0_i32_0 = arith.constant 0 : i32
    return %arg0, %c0_i32, %arg1 : i32, i32, i32
  }
  func.func @transform_2(%arg0: i32, %arg1: i32) -> (i32, i32, i32) {
    %c0_i32 = arith.constant 0 : i32
    %c0_i32_0 = arith.constant 0 : i32
    return %arg0, %c0_i32, %arg1 : i32, i32, i32
  }
}

</mosaic_0001>

<llo_original>
// kernel: tpu_custom_call.1
$region0: #{tpu_custom_call.1}
  #allocation0 [shape = 'u32[]', space=smem, size = 0x4, offset = 0x4, fixed_abs, tag = 'smem constant byte address 0x4 - core index']
  #allocation1 [shape = 'u32[144,128]{1,0:T(1,128)}', space=vmem, size = 0x12000, scoped, tag = 'internal scratch']
  %s0 = inlined_call_operand.hbm [shape: f32[8,4], index: 0, kind: input, shape index: {}]
  %s1 = inlined_call_operand.hbm [shape: f32[2,4,256], index: 1, kind: input, shape index: {}]
  %s2 = inlined_call_operand.hbm [shape: f32[2,8,256], index: 2, kind: output, shape index: {}]
  %s3 = sld [smem:[#allocation0]]
  $region49: #{tpu_custom_call.1} parent=0
    _
  %s5 = ssub.s32 1, %s3
  %s6 = scalar_select 0, %s5, %s3
  $region1: #{tpu_custom_call.1} parent=0
    #allocation2 [shape = 'u8[4096]{0}', space=vmem, size = 0x1000, scoped, tag = 'input window, operand 0, single buffered']
    #allocation3 [shape = 's32[2]{0}', space=sflag, size = 0x8, scoped, tag = 'scoped memory for tpu_custom_call.1']
    #allocation4 [shape = 's32[2]{0}', space=sflag, size = 0x8, scoped, tag = 'scoped memory for tpu_custom_call.1']
    #allocation5 [shape = 'u8[8192]{0}', space=vmem, size = 0x2000, scoped, tag = 'input window, operand 1']
    #allocation6 [shape = 's32[2]{0}', space=sflag, size = 0x8, scoped, tag = 'scoped memory for tpu_custom_call.1']
    #allocation7 [shape = 'u8[16384]{0}', space=vmem, size = 0x4000, scoped, tag = 'output window, operand 0']
    %7 = vsyncpa [#allocation3], 0
    %8 = vsyncpa [#allocation6], 0
    %s9 = scalar_lea.sflag [#allocation6], 1
    %10 = vsyncpa %s9, 0
    %11 = vsyncpa [#allocation4], 0
    %s12 = scalar_lea.sflag [#allocation4], 1
    %13 = vsyncpa %s12, 0
    loop: start=0, step=1, limit=4
    $region2: #{tpu_custom_call.1} parent=1 // loop_pre_header
      _
    $region3: #{tpu_custom_call.1} parent=1 // loop_header
      %s15 = sphi 0, %s19
      %p16 = scmp.ge.s32.totalorder %s15, 4
      %s22 = sphi 0, %s34
      %s23 = sphi 0, %s30
      %s24 = sphi 0, %s22
      %s25 = sphi 0, %s23
      %s26 = sphi 0, %s24
      %s27 = sphi 0, %s25
      %s35 = sphi 0, %s35
      %s37 = sphi 0, %s35
      %s38 = sphi 0, %s37
      %s52 = sphi 0, %s38
      %s60 = sphi 0, %s62
      %s63 = sphi 0, %s60
      %s64 = sphi 0, %s63
      %s80 = sphi 0, %s64
      %s88 = sphi 0, %s90
      %s91 = sphi 0, %s88
      %s92 = sphi 0, %s91
      %s108 = sphi 0, %s92
    $region4: #{tpu_custom_call.1} parent=1 // loop_header_branch
      %18 = sbr.rel (%p16) target = $region8
    $region5: #{tpu_custom_call.1} parent=1 // loop_body
      %s20 = ssub.s32 %s15, 1
      %s21 = ssub.s32 %s15, 2
      %s28 = sadd.s32 1, %s23
      %p29 = scmp.ge.s32.totalorder %s28, 1
      %s30 = scalar_select %p29, 0, %s28
      %s31 = sadd.s32 1, %s22
      %s32 = scalar_select %p29, %s31, %s22
      %p33 = scmp.ge.s32.totalorder %s32, 2
      %s34 = scalar_select %p33, 0, %s32
      %s36 = sadd.s32 %s35, 1
      %p39 = scmp.eq.s32.totalorder %s15, 1
      %p40 = scmp.ne.s32.totalorder %s35, %s37
      %p41 = scmp.eq.s32.totalorder %s15, 0
      %p42 = por %p40, %p41
      %p43 = scmp.ne.s32.totalorder %s35, %s37
      %p44 = scmp.eq.s32.totalorder %s20, 1
      %p45 = por %p43, %p44
      %p46 = scmp.ne.s32.totalorder %s37, %s38
      %p47 = scmp.eq.s32.totalorder %s20, 0
      %p48 = por %p46, %p47
      %p49 = scmp.ne.s32.totalorder %s37, %s38
      %p50 = scmp.eq.s32.totalorder %s21, 1
      %p51 = por %p49, %p50
      %p53 = scmp.ne.s32.totalorder %s38, %s52
      %p54 = scmp.eq.s32.totalorder %s21, 0
      %p55 = por %p53, %p54
      %s56 = ssub.s32 %s22, %s34
      %s57 = ssub.s32 %s23, %s30
      %s58 = sor.u32 %s56, %s57
      %p59 = scmp.eq.s32.totalorder %s58, 0
      %s61 = sadd.s32 %s60, 1
      %s62 = scalar_select %p59, %s60, %s61
      %p65 = pneg %p59
      %p66 = scmp.eq.s32.totalorder %s15, 1
      %p67 = por %p65, %p66
      %p68 = scmp.ne.s32.totalorder %s60, %s63
      %p69 = scmp.eq.s32.totalorder %s15, 0
      %p70 = por %p68, %p69
      %p71 = scmp.ne.s32.totalorder %s60, %s63
      %p72 = scmp.eq.s32.totalorder %s20, 1
      %p73 = por %p71, %p72
      %p74 = scmp.ne.s32.totalorder %s63, %s64
      %p75 = scmp.eq.s32.totalorder %s20, 0
      %p76 = por %p74, %p75
      %p77 = scmp.ne.s32.totalorder %s63, %s64
      %p78 = scmp.eq.s32.totalorder %s21, 1
      %p79 = por %p77, %p78
      %p81 = scmp.ne.s32.totalorder %s64, %s80
      %p82 = scmp.eq.s32.totalorder %s21, 0
      %p83 = por %p81, %p82
      %s84 = ssub.s32 %s22, %s34
      %s85 = ssub.s32 %s23, %s30
      %s86 = sor.u32 %s84, %s85
      %p87 = scmp.eq.s32.totalorder %s86, 0
      %s89 = sadd.s32 %s88, 1
      %s90 = scalar_select %p87, %s88, %s89
      %p93 = pneg %p87
      %p94 = scmp.eq.s32.totalorder %s15, 1
      %p95 = por %p93, %p94
      %p96 = scmp.ne.s32.totalorder %s88, %s91
      %p97 = scmp.eq.s32.totalorder %s15, 0
      %p98 = por %p96, %p97
      %p99 = scmp.ne.s32.totalorder %s88, %s91
      %p100 = scmp.eq.s32.totalorder %s20, 1
      %p101 = por %p99, %p100
      %p102 = scmp.ne.s32.totalorder %s91, %s92
      %p103 = scmp.eq.s32.totalorder %s20, 0
      %p104 = por %p102, %p103
      %p105 = scmp.ne.s32.totalorder %s91, %s92
      %p106 = scmp.eq.s32.totalorder %s21, 1
      %p107 = por %p105, %p106
      %p109 = scmp.ne.s32.totalorder %s92, %s108
      %p110 = scmp.eq.s32.totalorder %s21, 0
      %p111 = por %p109, %p110
      %p112 = scmp.le.s32.totalorder 1, %s15
      %p113 = scmp.lt.s32.totalorder %s15, 3
      %p114 = pnand %p112, %p113
      %p115 = pneg %p114
      // Predicated region
      $region9: #{tpu_custom_call.1} parent=5 // pred_check
        _
      $region10: #{tpu_custom_call.1} parent=5 // pred_check_branch
        %117 = sbr.rel (%p114) target = $region12
      $region11: #{tpu_custom_call.1} parent=5 // pred_region
        %s118 = ssub.s32 %s15, 1
        // Predicated region
        $region13: #{tpu_custom_call.1} parent=11 // pred_check
          %p119 = pneg %p48
        $region14: #{tpu_custom_call.1} parent=11 // pred_check_branch
          %121 = sbr.rel (%p119) target = $region16
        $region15: #{tpu_custom_call.1} parent=11 // pred_region
          %s123 = ssub.s32 128, 128
          %124 = vsyncadd [#allocation3], %s123
          %s126 = sshll.u32 [#allocation2], 4
          %s127 = int_to_ptr.vmem [resolvable:$true] %s126
          %129 = dma.hbm_to_vmem [thread:$0]  %s0, 128, %s127, [#allocation3]
        $region16: #{tpu_custom_call.1} parent=11 // pred_fallthru
          _
      $region12: #{tpu_custom_call.1} parent=5 // pred_fallthru
        _
      %p130 = scmp.lt.s32.totalorder %s15, 2
      // Predicated region
      $region17: #{tpu_custom_call.1} parent=5 // pred_check
        %p131 = pneg %p130
      $region18: #{tpu_custom_call.1} parent=5 // pred_check_branch
        %133 = sbr.rel (%p131) target = $region20
      $region19: #{tpu_custom_call.1} parent=5 // pred_region
        // Predicated region
        $region21: #{tpu_custom_call.1} parent=19 // pred_check
          %p134 = pneg %p70
        $region22: #{tpu_custom_call.1} parent=19 // pred_check_branch
          %136 = sbr.rel (%p134) target = $region24
        $region23: #{tpu_custom_call.1} parent=19 // pred_region
          %s137 = sand.u32 %s60, 1
          %s138 = scalar_lea.sflag [#allocation6], %s137
          %s139 = sand.u32 %s60, 1
          %s140 = smul.addr %s139, 8
          %s141 = scalar_lea.vmem [#allocation5], %s140
          %s142 = smul.u32 2, %s23
          %s144 = ssub.s32 128, 128
          %145 = vsyncadd %s138, %s144
          %s146 = smul.addr %s22, 2
          %s147 = sadd.s32 %s142, %s146
          %s148 = smul.addr %s147, 64
          %s149 = scalar_lea.hbm %s1, %s148
          %s151 = sshll.u32 %s141, 4
          %s152 = int_to_ptr.vmem [resolvable:$true] %s151
          %154 = dma.hbm_to_vmem [thread:$0]  %s149, 128, %s152, %s138
        $region24: #{tpu_custom_call.1} parent=19 // pred_fallthru
          _
      $region20: #{tpu_custom_call.1} parent=5 // pred_fallthru
        _
      %p155 = scmp.le.s32.totalorder 1, %s15
      %p156 = scmp.lt.s32.totalorder %s15, 3
      %p157 = pnand %p155, %p156
      %p158 = pneg %p157
      // Predicated region
      $region25: #{tpu_custom_call.1} parent=5 // pred_check
        _
      $region26: #{tpu_custom_call.1} parent=5 // pred_check_branch
        %160 = sbr.rel (%p157) target = $region28
      $region27: #{tpu_custom_call.1} parent=5 // pred_region
        %s161 = ssub.s32 %s15, 1
        // Predicated region
        $region29: #{tpu_custom_call.1} parent=27 // pred_check
          %p162 = pneg %p48
        $region30: #{tpu_custom_call.1} parent=27 // pred_check_branch
          %164 = sbr.rel (%p162) target = $region32
        $region31: #{tpu_custom_call.1} parent=27 // pred_region
          %165 = dma.done [#allocation3], 128
        $region32: #{tpu_custom_call.1} parent=27 // pred_fallthru
          _
        %s166 = sand.u32 %s63, 1
        %s167 = scalar_lea.sflag [#allocation6], %s166
        %s168 = sand.u32 %s63, 1
        %s169 = smul.addr %s168, 8
        %s170 = scalar_lea.vmem [#allocation5], %s169
        // Predicated region
        $region33: #{tpu_custom_call.1} parent=27 // pred_check
          %p171 = pneg %p76
        $region34: #{tpu_custom_call.1} parent=27 // pred_check_branch
          %173 = sbr.rel (%p171) target = $region36
        $region35: #{tpu_custom_call.1} parent=27 // pred_region
          %174 = dma.done %s167, 128
        $region36: #{tpu_custom_call.1} parent=27 // pred_fallthru
          _
        %p175 = pneg %p48
        %p176 = pneg %p45
        %s177 = sand.u32 %s63, 1
        %s178 = scalar_lea.sflag [#allocation6], %s177
        %s179 = sand.u32 %s63, 1
        %s180 = smul.addr %s179, 8
        %s181 = scalar_lea.vmem [#allocation5], %s180
        %p182 = pneg %p76
        %p183 = pneg %p73
        %p184 = pneg %p104
        %p185 = pneg %p101
        %s186 = sand.u32 %s91, 1
        %s187 = scalar_lea.sflag [#allocation4], %s186
        %s188 = sand.u32 %s91, 1
        %s189 = smul.addr %s188, 16
        %s190 = scalar_lea.vmem [#allocation7], %s189
        %s191 = smul.u32 2, %s25
        %s192 = smul.u32 2, %s25
        %v193 = vld [vmem:[#allocation2] sm:$0xff]
        %v194 = vld [vmem:[%s170] sm:$0xff]
        %v196 = vcombine.high %v194, %v194
        %vm197 = vcmask 31744
        %v199 = vsel %vm197, %v193, 0
        %vm201 = vcmask 1043456
        %v202 = vsel %vm201, %v194, 0
        %v204 = vsel %vm201, %v196, 0
        %206 = vmatprep.subr.mxu0 %v204
        %207 = vmatpush1.msra.mxu0 %v202
        %208 = vmatprep.subr.mxu0 0.0
        %209 = vmatpush1.msra.mxu0 0.0
        %210 = vmatprep.subr.mxu0 0.0
        %211 = vmatpush1.msra.mxu0 0.0
        %212 = vmatprep.subr.mxu0 0.0
        %213 = vmatpush1.msra.mxu0 0.0
        %214 = vmatprep.subr.mxu0 0.0
        %215 = vmatpush1.msra.mxu0 0.0
        %216 = vmatprep.subr.mxu0 0.0
        %217 = vmatpush1.msra.mxu0 0.0
        %218 = vmatprep.subr.mxu0 0.0
        %219 = vmatpush1.msra.mxu0 0.0
        %220 = vmatprep.subr.mxu0 0.0
        %221 = vmatpush1.msra.mxu0 0.0
        %222 = vmatprep.subr.mxu0 0.0
        %223 = vmatpush1.msra.mxu0 0.0
        %224 = vmatprep.subr.mxu0 0.0
        %225 = vmatpush1.msra.mxu0 0.0
        %226 = vmatprep.subr.mxu0 0.0
        %227 = vmatpush1.msra.mxu0 0.0
        %228 = vmatprep.subr.mxu0 0.0
        %229 = vmatpush1.msra.mxu0 0.0
        %230 = vmatprep.subr.mxu0 0.0
        %231 = vmatpush1.msra.mxu0 0.0
        %232 = vmatprep.subr.mxu0 0.0
        %233 = vmatpush1.msra.mxu0 0.0
        %234 = vmatprep.subr.mxu0 0.0
        %235 = vmatpush1.msra.mxu0 0.0
        %236 = vmatprep.subr.mxu0 0.0
        %237 = vmatpush1.msra.mxu0 0.0
        %238 = vmatprep.subr.mxu0 0.0
        %239 = vmatpush1.msra.mxu0 0.0
        %240 = vmatprep.subr.mxu0 0.0
        %241 = vmatpush1.msra.mxu0 0.0
        %242 = vmatprep.subr.mxu0 0.0
        %243 = vmatpush1.msra.mxu0 0.0
        %244 = vmatprep.subr.mxu0 0.0
        %245 = vmatpush1.msra.mxu0 0.0
        %246 = vmatprep.subr.mxu0 0.0
        %247 = vmatpush1.msra.mxu0 0.0
        %248 = vmatprep.subr.mxu0 0.0
        %249 = vmatpush1.msra.mxu0 0.0
        %250 = vmatprep.subr.mxu0 0.0
        %251 = vmatpush1.msra.mxu0 0.0
        %252 = vmatprep.subr.mxu0 0.0
        %253 = vmatpush1.msra.mxu0 0.0
        %254 = vmatprep.subr.mxu0 0.0
        %255 = vmatpush1.msra.mxu0 0.0
        %256 = vmatprep.subr.mxu0 0.0
        %257 = vmatpush1.msra.mxu0 0.0
        %258 = vmatprep.subr.mxu0 0.0
        %259 = vmatpush1.msra.mxu0 0.0
        %260 = vmatprep.subr.mxu0 0.0
        %261 = vmatpush1.msra.mxu0 0.0
        %262 = vmatprep.subr.mxu0 0.0
        %263 = vmatpush1.msra.mxu0 0.0
        %264 = vmatprep.subr.mxu0 0.0
        %265 = vmatpush1.msra.mxu0 0.0
        %266 = vmatprep.subr.mxu0 0.0
        %267 = vmatpush1.msra.mxu0 0.0
        %268 = vmatprep.subr.mxu0 0.0
        %269 = vmatpush1.msra.mxu0 0.0
        %270 = vmatprep.mubr.f32.mxu0 0.0
        %271 = vmatmul.mubr.f32.gmra.mrb[0].mxu0 %v199
        %v272 = vpop.f32.mrb[0].mxu0
        %v273 = vadd.f32 0.0, %v272
        %v274 = vpop.f32.mrb[0].mxu0
        %v275 = vadd.f32 0.0, %v274
        %276 = vdwg.mxu0
        %277 = vst [vmem:[%s190] sm:$0xff] %v273
        %278 = vst [vmem:[%s190 + $0x8] sm:$0xff] %v275
        %s279 = sand.u32 %s91, 1
        %s280 = scalar_lea.sflag [#allocation4], %s279
        %s281 = sand.u32 %s91, 1
        %s282 = smul.addr %s281, 16
        %s283 = scalar_lea.vmem [#allocation7], %s282
        // Predicated region
        $region37: #{tpu_custom_call.1} parent=27 // pred_check
          %p284 = pneg %p101
        $region38: #{tpu_custom_call.1} parent=27 // pred_check_branch
          %286 = sbr.rel (%p284) target = $region40
        $region39: #{tpu_custom_call.1} parent=27 // pred_region
          %s287 = smul.u32 2, %s25
          %s289 = ssub.s32 256, 256
          %290 = vsyncadd %s280, %s289
          %s291 = smul.addr %s24, 2
          %s292 = sadd.s32 %s287, %s291
          %s293 = smul.addr %s292, 128
          %s294 = scalar_lea.hbm %s2, %s293
          %s296 = sshll.u32 %s283, 4
          %s297 = int_to_ptr.vmem [resolvable:$true] %s296
          %299 = dma.vmem_to_hbm [thread:$0]  %s297, 256, %s294, %s280
        $region40: #{tpu_custom_call.1} parent=27 // pred_fallthru
          _
      $region28: #{tpu_custom_call.1} parent=5 // pred_fallthru
        _
      %p300 = scmp.le.s32.totalorder 2, %s15
      // Predicated region
      $region41: #{tpu_custom_call.1} parent=5 // pred_check
        %p301 = pneg %p300
      $region42: #{tpu_custom_call.1} parent=5 // pred_check_branch
        %303 = sbr.rel (%p301) target = $region44
      $region43: #{tpu_custom_call.1} parent=5 // pred_region
        %s304 = ssub.s32 %s15, 2
        // Predicated region
        $region45: #{tpu_custom_call.1} parent=43 // pred_check
          %p305 = pneg %p107
        $region46: #{tpu_custom_call.1} parent=43 // pred_check_branch
          %307 = sbr.rel (%p305) target = $region48
        $region47: #{tpu_custom_call.1} parent=43 // pred_region
          %s308 = sand.u32 %s92, 1
          %s309 = scalar_lea.sflag [#allocation4], %s308
          %s310 = sand.u32 %s92, 1
          %s311 = smul.addr %s310, 16
          %s312 = scalar_lea.vmem [#allocation7], %s311
          %313 = dma.done %s309, 256
        $region48: #{tpu_custom_call.1} parent=43 // pred_fallthru
          _
      $region44: #{tpu_custom_call.1} parent=5 // pred_fallthru
        _
    $region6: #{tpu_custom_call.1} parent=1 // loop_footer
      %s19 = sadd.s32 1, %s15
    $region7: #{tpu_custom_call.1} parent=1 // loop_footer_branch
      %14 = sbr.rel target = $region3
    $region8: #{tpu_custom_call.1} parent=1 // loop_exit
      _
    %314 = vsyncpa [#allocation3], 1
    %s315 = scalar_lea.sflag [#allocation3], 1
    %316 = vsyncpa %s315, 1
    %317 = vsyncpa [#allocation6], 1
    %s318 = scalar_lea.sflag [#allocation6], 1
    %319 = vsyncpa %s318, 1
    %320 = vsyncpa [#allocation4], 1
    %s321 = scalar_lea.sflag [#allocation4], 1
    %322 = vsyncpa %s321, 1

</llo_original>
